<compile_context>
chip_gen: v7x
topology: tpu7x:2x2x1
jax: 0.10.0
libtpu: 0.0.40
codegen_flags: <defaults>
</compile_context>

<pallas_src>
import jax
import jax.numpy as jnp
from jax.experimental import pallas as pl
from jax.experimental.pallas import tpu as pltpu


def _make_ce_kernel(num_classes, class_tile):
    """Kernel: per-row NLL with online logsumexp across class tiles."""

    def kernel(logits_ref, tgt_ref, loss_ref, m_sc, l_sc, p_sc):
        k = pl.program_id(1)

        @pl.when(k == 0)
        def _init():
            m_sc[...] = jnp.full_like(m_sc, -jnp.inf)
            l_sc[...] = jnp.zeros_like(l_sc)
            p_sc[...] = jnp.zeros_like(p_sc)

        x = logits_ref[...].astype(jnp.float32)            # (tr, tc) f32, VMEM only
        t = tgt_ref[...]                                    # (tr, 1) int32

        # Global class index of every lane in this class tile.
        col = k * class_tile + jax.lax.broadcasted_iota(jnp.int32, x.shape, 1)

        # Accumulate the target logit (raw value; its class falls in exactly
        # one class tile).  No dynamic lane gather on TPU -> mask + sum.
        p_sc[...] += jnp.sum(jnp.where(col == t, x, 0.0), axis=-1, keepdims=True)

        # Mask the ragged last class tile before the row-wise reductions.
        x = jnp.where(col < num_classes, x, -jnp.inf)

        # Online (streaming) logsumexp across class tiles.
        m_prev = m_sc[...]
        m_new = jnp.maximum(m_prev, jnp.max(x, axis=-1, keepdims=True))
        l_sc[...] = l_sc[...] * jnp.exp(m_prev - m_new) + jnp.sum(
            jnp.exp(x - m_new), axis=-1, keepdims=True)
        m_sc[...] = m_new

        @pl.when(k == pl.num_programs(1) - 1)
        def _finalize():
            loss_ref[...] = m_sc[...] + jnp.log(l_sc[...]) - p_sc[...]

    return kernel


def _vmem_limit_bytes():
    try:
        cap = int(pltpu.get_tpu_info().vmem_capacity_bytes)
    except Exception:
        cap = 64 * 1024 * 1024                              # conservative (v7x per-TC)
    # Both v7x TensorCores run concurrently under the 'parallel' row axis; keep
    # the scoped limit per-TC safe regardless of what the query reports.
    return min(48 * 1024 * 1024, (cap * 3) // 4)


def _round_up(x, m):
    return ((x + m - 1) // m) * m


def _round_down(x, m):
    return (x // m) * m


def _choose_tiles(n_rows, num_classes, itemsize, budget):
    """Pick (row_tile, class_tile) so the VMEM working set fits `budget`.

    Per-row VMEM bytes for a class tile of width ct:
      2 * ct * itemsize   double-buffered input logits block
      4 * ct              f32 upcast of the tile (live across the reductions)
      4 * ct              int32 iota / compare intermediate
      ~4096               lane-padded (x, 1) target / output / scratch rows
    """

    def per_row(ct):
        return ct * (2 * itemsize + 8) + 4096

    rows_target = min(256, _round_up(n_rows, 8))
    if per_row(num_classes) * rows_target <= budget:
        class_tile = num_classes                            # single class tile
    else:
        ct = (budget // rows_target - 4096) // (2 * itemsize + 8)
        class_tile = max(128, _round_down(int(ct), 128))

    row_tile = budget // per_row(class_tile)
    row_tile = max(8, _round_down(int(row_tile), 8))
    row_tile = min(row_tile, _round_up(n_rows, 8))
    return int(row_tile), int(class_tile)


def cross_entropy_loss(logits, targets, *, row_tile=None, class_tile=None):
    """logits: (..., C) float (any dtype), targets: (...) int -> scalar mean CE."""
    C = logits.shape[-1]
    logits2d = logits.reshape(-1, C)                        # keep input dtype (bf16 stays bf16)
    tgt2d = targets.reshape(-1, 1).astype(jnp.int32)
    N = logits2d.shape[0]

    vmem_limit = _vmem_limit_bytes()
    budget = int(vmem_limit * 0.6)                          # headroom for compiler scratch
    auto_rt, auto_ct = _choose_tiles(N, C, jnp.dtype(logits2d.dtype).itemsize, budget)
    row_tile = auto_rt if row_tile is None else int(row_tile)
    class_tile = auto_ct if class_tile is None else int(class_tile)

    grid = (pl.cdiv(N, row_tile), pl.cdiv(C, class_tile))

    per_row_loss = pl.pallas_call(
        _make_ce_kernel(C, class_tile),
        out_shape=jax.ShapeDtypeStruct((N, 1), jnp.float32),
        grid_spec=pltpu.PrefetchScalarGridSpec(
            num_scalar_prefetch=0,
            grid=grid,
            in_specs=[
                pl.BlockSpec((row_tile, class_tile), lambda i, k: (i, k)),
                pl.BlockSpec((row_tile, 1), lambda i, k: (i, 0)),
            ],
            out_specs=pl.BlockSpec((row_tile, 1), lambda i, k: (i, 0)),
            scratch_shapes=[
                pltpu.VMEM((row_tile, 1), jnp.float32),     # running max
                pltpu.VMEM((row_tile, 1), jnp.float32),     # running sum-exp
                pltpu.VMEM((row_tile, 1), jnp.float32),     # picked target logit
            ],
        ),
        compiler_params=pltpu.CompilerParams(
            dimension_semantics=("parallel", "arbitrary"),  # row tiles independent
            vmem_limit_bytes=vmem_limit,
        ),
    )(logits2d, tgt2d)

    # reduction='mean' over all rows (no ignore_index / class weights).
    return jnp.sum(per_row_loss[:, 0]) / jnp.float32(N)


def _reference(logits, targets):
    C = logits.shape[-1]
    x = logits.reshape(-1, C).astype(jnp.float32)
    t = targets.reshape(-1).astype(jnp.int32)
    logp = jax.nn.log_softmax(x, axis=-1)
    nll = -jnp.take_along_axis(logp, t[:, None], axis=-1)[:, 0]
    return jnp.mean(nll)


if __name__ == "__main__":
    key = jax.random.PRNGKey(0)
    k1, k2, k3, k4 = jax.random.split(key, 4)

    # Case 1: module-shaped small input (batch=2, seq=8, classes=32).
    B, T, C = 2, 8, 32
    logits = jax.random.normal(k1, (B, T, C), dtype=jnp.float32)
    targets = jax.random.randint(k2, (B, T), 0, C, dtype=jnp.int32)
    loss = jax.block_until_ready(cross_entropy_loss(logits, targets))
    ref = _reference(logits, targets)
    assert jnp.allclose(loss, ref, atol=1e-5, rtol=1e-5), (loss, ref)

    # Case 2: ragged rows (N=38, not a multiple of the row tile) plus class
    # tiling (C=160 split into 128-wide tiles with a masked ragged edge) to
    # exercise the online-logsumexp / edge-block paths.
    B2, T2, C2 = 2, 19, 160
    logits2 = jax.random.normal(k3, (B2, T2, C2), dtype=jnp.float32)
    targets2 = jax.random.randint(k4, (B2, T2), 0, C2, dtype=jnp.int32)
    loss2 = jax.block_until_ready(
        cross_entropy_loss(logits2, targets2, row_tile=16, class_tile=128))
    ref2 = _reference(logits2, targets2)
    assert jnp.allclose(loss2, ref2, atol=1e-5, rtol=1e-5), (loss2, ref2)

    print("KERNEL_OK")
</pallas_src>

<mosaic_0001>
module attributes {stable_mosaic.version = 11 : i64} {
  func.func @kernel(%arg0: i32, %arg1: i32, %arg2: memref<16x32xf32, #tpu.memory_space<vmem>>, %arg3: memref<16x1xi32, #tpu.memory_space<vmem>>, %arg4: memref<16x1xf32, #tpu.memory_space<vmem>>, %arg5: memref<16x1xf32, #tpu.memory_space<vmem>>, %arg6: memref<16x1xf32, #tpu.memory_space<vmem>>, %arg7: memref<16x1xf32, #tpu.memory_space<vmem>>) attributes {dimension_semantics = [#tpu.dimension_semantics<parallel>, #tpu.dimension_semantics<arbitrary>], iteration_bounds = array<i64: 1, 1>, scalar_prefetch = 0 : i64, scratch_operands = 3 : i64, tpu.core_type = #tpu.core_type<tc>, window_params = [{transform_indices = @transform_0, window_bounds = array<i64: 16, 32>}, {transform_indices = @transform_1, window_bounds = array<i64: 16, 1>}, {transform_indices = @transform_2, window_bounds = array<i64: 16, 1>}]} {
    %c0_i32 = arith.constant 0 : i32
    %0 = arith.cmpi eq, %arg1, %c0_i32 : i32
    %1 = arith.extui %0 : i1 to i32
    %c0_i32_0 = arith.constant 0 : i32
    %2 = arith.cmpi ne, %1, %c0_i32_0 : i32
    scf.if %2 {
      %cst_23 = arith.constant 0xFF800000 : f32
      %41 = vector.broadcast %cst_23 : f32 to vector<16x1xf32>
      %c0_24 = arith.constant 0 : index
      %c0_25 = arith.constant 0 : index
      %42 = vector.load %arg5[%c0_24, %c0_25] : memref<16x1xf32, #tpu.memory_space<vmem>>, vector<16x1xf32>
      tpu.vector_store %arg5[%c0_24, %c0_25], %41 {strides = array<i32>} : memref<16x1xf32, #tpu.memory_space<vmem>>, vector<16x1xf32>,
      %cst_26 = arith.constant 0.000000e+00 : f32
      %43 = vector.broadcast %cst_26 : f32 to vector<16x1xf32>
      %c0_27 = arith.constant 0 : index
      %c0_28 = arith.constant 0 : index
      %44 = vector.load %arg6[%c0_27, %c0_28] : memref<16x1xf32, #tpu.memory_space<vmem>>, vector<16x1xf32>
      tpu.vector_store %arg6[%c0_27, %c0_28], %43 {strides = array<i32>} : memref<16x1xf32, #tpu.memory_space<vmem>>, vector<16x1xf32>,
      %cst_29 = arith.constant 0.000000e+00 : f32
      %45 = vector.broadcast %cst_29 : f32 to vector<16x1xf32>
      %c0_30 = arith.constant 0 : index
      %c0_31 = arith.constant 0 : index
      %46 = vector.load %arg7[%c0_30, %c0_31] : memref<16x1xf32, #tpu.memory_space<vmem>>, vector<16x1xf32>
      tpu.vector_store %arg7[%c0_30, %c0_31], %45 {strides = array<i32>} : memref<16x1xf32, #tpu.memory_space<vmem>>, vector<16x1xf32>,
    } else {
    }
    %c0 = arith.constant 0 : index
    %c0_1 = arith.constant 0 : index
    %3 = vector.load %arg2[%c0, %c0_1] : memref<16x32xf32, #tpu.memory_space<vmem>>, vector<16x32xf32>
    %c0_2 = arith.constant 0 : index
    %c0_3 = arith.constant 0 : index
    %4 = vector.load %arg3[%c0_2, %c0_3] : memref<16x1xi32, #tpu.memory_space<vmem>>, vector<16x1xi32>
    %c32_i32 = arith.constant 32 : i32
    %5 = arith.muli %arg1, %c32_i32 : i32
    %6 = tpu.iota {dimensions = array<i32: 1>} : vector<16x32xi32>
    %7 = vector.broadcast %5 : i32 to vector<16x32xi32>
    %8 = arith.addi %7, %6 : vector<16x32xi32>
    %c0_4 = arith.constant 0 : index
    %c0_5 = arith.constant 0 : index
    %9 = vector.load %arg7[%c0_4, %c0_5] : memref<16x1xf32, #tpu.memory_space<vmem>>, vector<16x1xf32>
    %10 = vector.broadcast %4 : vector<16x1xi32> to vector<16x32xi32>
    %11 = arith.cmpi eq, %8, %10 : vector<16x32xi32>
    %cst = arith.constant 0.000000e+00 : f32
    %12 = vector.broadcast %cst : f32 to vector<16x32xf32>
    %13 = arith.select %11, %3, %12 : vector<16x32xi1>, vector<16x32xf32>
    %cst_6 = arith.constant dense<0.000000e+00> : vector<16xf32>
    %14 = vector.multi_reduction <add>, %13, %cst_6 [1] : vector<16x32xf32> to vector<16xf32>
    %15 = vector.shape_cast %14 : vector<16xf32> to vector<16x1xf32>
    %16 = arith.addf %9, %15 : vector<16x1xf32>
    %c0_7 = arith.constant 0 : index
    %c0_8 = arith.constant 0 : index
    %17 = vector.load %arg7[%c0_7, %c0_8] : memref<16x1xf32, #tpu.memory_space<vmem>>, vector<16x1xf32>
    tpu.vector_store %arg7[%c0_7, %c0_8], %16 {strides = array<i32>} : memref<16x1xf32, #tpu.memory_space<vmem>>, vector<16x1xf32>,
    %c32_i32_9 = arith.constant 32 : i32
    %18 = vector.broadcast %c32_i32_9 : i32 to vector<16x32xi32>
    %19 = arith.cmpi slt, %8, %18 : vector<16x32xi32>
    %cst_10 = arith.constant 0xFF800000 : f32
    %20 = vector.broadcast %cst_10 : f32 to vector<16x32xf32>
    %21 = arith.select %19, %3, %20 : vector<16x32xi1>, vector<16x32xf32>
    %c0_11 = arith.constant 0 : index
    %c0_12 = arith.constant 0 : index
    %22 = vector.load %arg5[%c0_11, %c0_12] : memref<16x1xf32, #tpu.memory_space<vmem>>, vector<16x1xf32>
    %cst_13 = arith.constant dense<0xFF800000> : vector<16xf32>
    %23 = vector.multi_reduction <maximumf>, %21, %cst_13 [1] : vector<16x32xf32> to vector<16xf32>
    %24 = vector.shape_cast %23 : vector<16xf32> to vector<16x1xf32>
    %25 = arith.maximumf %22, %24 : vector<16x1xf32>
    %c0_14 = arith.constant 0 : index
    %c0_15 = arith.constant 0 : index
    %26 = vector.load %arg6[%c0_14, %c0_15] : memref<16x1xf32, #tpu.memory_space<vmem>>, vector<16x1xf32>
    %27 = arith.subf %22, %25 : vector<16x1xf32>
    %28 = math.exp %27 : vector<16x1xf32>
    %29 = arith.mulf %26, %28 : vector<16x1xf32>
    %30 = vector.broadcast %25 : vector<16x1xf32> to vector<16x32xf32>
    %31 = arith.subf %21, %30 : vector<16x32xf32>
    %32 = math.exp %31 : vector<16x32xf32>
    %cst_16 = arith.constant dense<0.000000e+00> : vector<16xf32>
    %33 = vector.multi_reduction <add>, %32, %cst_16 [1] : vector<16x32xf32> to vector<16xf32>
    %34 = vector.shape_cast %33 : vector<16xf32> to vector<16x1xf32>
    %35 = arith.addf %29, %34 : vector<16x1xf32>
    %c0_17 = arith.constant 0 : index
    %c0_18 = arith.constant 0 : index
    %36 = vector.load %arg6[%c0_17, %c0_18] : memref<16x1xf32, #tpu.memory_space<vmem>>, vector<16x1xf32>
    tpu.vector_store %arg6[%c0_17, %c0_18], %35 {strides = array<i32>} : memref<16x1xf32, #tpu.memory_space<vmem>>, vector<16x1xf32>,
    %c0_19 = arith.constant 0 : index
    %c0_20 = arith.constant 0 : index
    %37 = vector.load %arg5[%c0_19, %c0_20] : memref<16x1xf32, #tpu.memory_space<vmem>>, vector<16x1xf32>
    tpu.vector_store %arg5[%c0_19, %c0_20], %25 {strides = array<i32>} : memref<16x1xf32, #tpu.memory_space<vmem>>, vector<16x1xf32>,
    %c0_i32_21 = arith.constant 0 : i32
    %38 = arith.cmpi eq, %arg1, %c0_i32_21 : i32
    %39 = arith.extui %38 : i1 to i32
    %c0_i32_22 = arith.constant 0 : i32
    %40 = arith.cmpi ne, %39, %c0_i32_22 : i32
    scf.if %40 {
      %c0_23 = arith.constant 0 : index
      %c0_24 = arith.constant 0 : index
      %41 = vector.load %arg5[%c0_23, %c0_24] : memref<16x1xf32, #tpu.memory_space<vmem>>, vector<16x1xf32>
      %c0_25 = arith.constant 0 : index
      %c0_26 = arith.constant 0 : index
      %42 = vector.load %arg6[%c0_25, %c0_26] : memref<16x1xf32, #tpu.memory_space<vmem>>, vector<16x1xf32>
      %43 = math.log %42 : vector<16x1xf32>
      %44 = arith.addf %41, %43 : vector<16x1xf32>
      %c0_27 = arith.constant 0 : index
      %c0_28 = arith.constant 0 : index
      %45 = vector.load %arg7[%c0_27, %c0_28] : memref<16x1xf32, #tpu.memory_space<vmem>>, vector<16x1xf32>
      %46 = arith.subf %44, %45 : vector<16x1xf32>
      %c0_29 = arith.constant 0 : index
      %c0_30 = arith.constant 0 : index
      %47 = vector.load %arg4[%c0_29, %c0_30] : memref<16x1xf32, #tpu.memory_space<vmem>>, vector<16x1xf32>
      tpu.vector_store %arg4[%c0_29, %c0_30], %46 {strides = array<i32>} : memref<16x1xf32, #tpu.memory_space<vmem>>, vector<16x1xf32>,
    } else {
    }
    return
  }
  func.func @transform_0(%arg0: i32, %arg1: i32) -> (i32, i32) {
    %c0_i32 = arith.constant 0 : i32
    return %arg0, %arg1 : i32, i32
  }
  func.func @transform_1(%arg0: i32, %arg1: i32) -> (i32, i32) {
    %c0_i32 = arith.constant 0 : i32
    %c0_i32_0 = arith.constant 0 : i32
    return %arg0, %c0_i32 : i32, i32
  }
  func.func @transform_2(%arg0: i32, %arg1: i32) -> (i32, i32) {
    %c0_i32 = arith.constant 0 : i32
    %c0_i32_0 = arith.constant 0 : i32
    return %arg0, %c0_i32 : i32, i32
  }
}

</mosaic_0001>

<llo_original>
// kernel: tpu_custom_call.1
$region0: #{tpu_custom_call.1}
  #allocation0 [shape = 'u32[]', space=smem, size = 0x4, offset = 0x4, fixed_abs, tag = 'smem constant byte address 0x4 - core index']
  #allocation1 [shape = 'u32[144,128]{1,0:T(1,128)}', space=vmem, size = 0x12000, scoped, tag = 'internal scratch']
  #allocation2 [shape = 'f32[16,1]{1,0:T(8,128)}', space=vmem, size = 0x2000, scoped, tag = 'scratch operand']
  #allocation3 [shape = 'f32[16,1]{1,0:T(8,128)}', space=vmem, size = 0x2000, scoped, tag = 'scratch operand']
  #allocation4 [shape = 'f32[16,1]{1,0:T(8,128)}', space=vmem, size = 0x2000, scoped, tag = 'scratch operand']
  %s0 = inlined_call_operand.vmem [shape: f32[16,32], index: 0, kind: input, shape index: {}]
  %s1 = inlined_call_operand.vmem [shape: s32[16,1], index: 1, kind: input, shape index: {}]
  %s2 = inlined_call_operand.vmem [shape: f32[16,1], index: 2, kind: output, shape index: {}]
  %s3 = sld [smem:[#allocation0]]
  $region26: #{tpu_custom_call.1} parent=0
    _
  %s5 = ssub.s32 1, %s3
  %s6 = scalar_select 0, %s5, %s3
  // Predicated region
  $region2: #{tpu_custom_call.1} parent=0 // pred_check
    _
  $region3: #{tpu_custom_call.1} parent=0 // pred_check_branch
    %8 = sbr.rel (0) target = $region5
  $region4: #{tpu_custom_call.1} parent=0 // pred_region
    _
  $region5: #{tpu_custom_call.1} parent=0 // pred_fallthru
    _
  // Predicated region
  $region6: #{tpu_custom_call.1} parent=0 // pred_check
    _
  $region7: #{tpu_custom_call.1} parent=0 // pred_check_branch
    %10 = sbr.rel (0) target = $region9
  $region8: #{tpu_custom_call.1} parent=0 // pred_region
    _
  $region9: #{tpu_custom_call.1} parent=0 // pred_fallthru
    _
  %p11 = scmp.eq.s32.totalorder 0, 0
  // Predicated region
  $region10: #{tpu_custom_call.1} parent=0 // pred_check
    %p12 = pneg %p11
  $region11: #{tpu_custom_call.1} parent=0 // pred_check_branch
    %14 = sbr.rel (%p12) target = $region13
  $region12: #{tpu_custom_call.1} parent=0 // pred_region
    %vm15 = vcmask 7168
    %16 = vst.msk [vmem:[#allocation2] sm:$0xff] %vm15, -inf
    %17 = vst.msk [vmem:[#allocation2 + $0x8] sm:$0xff] %vm15, -inf
    %18 = vst.msk [vmem:[#allocation3] sm:$0xff] %vm15, 0.0
    %19 = vst.msk [vmem:[#allocation3 + $0x8] sm:$0xff] %vm15, 0.0
    %20 = vst.msk [vmem:[#allocation4] sm:$0xff] %vm15, 0.0
    %21 = vst.msk [vmem:[#allocation4 + $0x8] sm:$0xff] %vm15, 0.0
  $region13: #{tpu_custom_call.1} parent=0 // pred_fallthru
    _
  %v22 = vld [vmem:[%s0] sm:$0xff]
  %v23 = vld [vmem:[%s0 + $0x8] sm:$0xff]
  %v24 = vld [vmem:[%s1] sm:$0xff]
  %v25 = vld [vmem:[%s1 + $0x8] sm:$0xff]
  %s26 = smul.u32 0, 32
  %v27 = vlaneseq
  %v28 = vand.u32 %v27, 127
  %v29 = vstv %s26
  %v30 = vadd.s32 %v29, %v28
  %v31 = vld [vmem:[#allocation4] sm:$0xff]
  %v32 = vld [vmem:[#allocation4 + $0x8] sm:$0xff]
  %33 = vset.pattern.permute.xlu0 0
  %34 = vperm.xlu0 %33, %v24
  %v35 = vpop.permute.xlu0 %34
  %36 = vset.pattern.permute.xlu0 0
  %37 = vperm.xlu0 %36, %v25
  %v38 = vpop.permute.xlu0 %37
  %vm39 = vcmp.eq.s32.totalorder %v30, %v35
  %vm40 = vcmp.eq.s32.totalorder %v30, %v38
  %v41 = vsel %vm39, %v22, 0.0
  %v42 = vsel %vm40, %v23, 0.0
  %vm43 = vcmask 261120
  %v44 = vsel %vm43, %v41, 0.0
  %45 = vadd.xlane.f32.xlu0 %v44
  %v46 = vpop.xlane.xlu0 %45
  %v47 = vsel %vm43, %v42, 0.0
  %48 = vadd.xlane.f32.xlu0 %v47
  %v49 = vpop.xlane.xlu0 %48
  %v50 = vadd.f32 %v31, %v46
  %v51 = vadd.f32 %v32, %v49
  %vm52 = vcmask 7168
  %53 = vst.msk [vmem:[#allocation4] sm:$0xff] %vm52, %v50
  %54 = vst.msk [vmem:[#allocation4 + $0x8] sm:$0xff] %vm52, %v51
  %vm55 = vcmp.lt.s32.totalorder %v30, 32
  %v56 = vsel %vm55, %v22, -inf
  %v57 = vsel %vm55, %v23, -inf
  %v58 = vld [vmem:[#allocation2] sm:$0xff]
  %v59 = vld [vmem:[#allocation2 + $0x8] sm:$0xff]
  %v60 = vsel %vm43, %v56, -inf
  %61 = vmax.xlane.f32.xlu0 %v60
  %v62 = vpop.xlane.xlu0 %61
  %v63 = vsel %vm43, %v57, -inf
  %64 = vmax.xlane.f32.xlu0 %v63
  %v65 = vpop.xlane.xlu0 %64
  %v66 = vmax.f32 %v58, %v62
  %v67 = vmax.f32 %v59, %v65
  %v68 = vld [vmem:[#allocation3] sm:$0xff]
  %v69 = vld [vmem:[#allocation3 + $0x8] sm:$0xff]
  %v70 = vsub.f32 %v58, %v66
  %v71 = vsub.f32 %v59, %v67
  %v72 = vmul.f32 %v70, 1.442695
  %v73 = vpow.pop %v72
  %v74 = vmul.f32 %v71, 1.442695
  %v75 = vpow.pop %v74
  %v76 = vmul.f32 %v68, %v73
  %v77 = vmul.f32 %v69, %v75
  %79 = vset.pattern.permute.xlu0 0
  %80 = vperm.xlu0 %79, %v66
  %v81 = vpop.permute.xlu0 %80
  %84 = vset.pattern.permute.xlu0 0
  %85 = vperm.xlu0 %84, %v67
  %v86 = vpop.permute.xlu0 %85
  %v88 = vsub.f32 %v56, %v81
  %v89 = vsub.f32 %v57, %v86
  %v90 = vmul.f32 %v88, 1.442695
  %v91 = vpow.pop %v90
  %v92 = vmul.f32 %v89, 1.442695
  %v93 = vpow.pop %v92
  %v94 = vsel %vm43, %v91, 0.0
  %95 = vadd.xlane.f32.xlu0 %v94
  %v96 = vpop.xlane.xlu0 %95
  %v97 = vsel %vm43, %v93, 0.0
  %98 = vadd.xlane.f32.xlu0 %v97
  %v99 = vpop.xlane.xlu0 %98
  %v100 = vadd.f32 %v76, %v96
  %v101 = vadd.f32 %v77, %v99
  %102 = vst.msk [vmem:[#allocation3] sm:$0xff] %vm52, %v100
  %103 = vst.msk [vmem:[#allocation3 + $0x8] sm:$0xff] %vm52, %v101
  %104 = vst.msk [vmem:[#allocation2] sm:$0xff] %vm52, %v66
  %105 = vst.msk [vmem:[#allocation2 + $0x8] sm:$0xff] %vm52, %v67
  // Predicated region
  $region14: #{tpu_custom_call.1} parent=0 // pred_check
    %p106 = pneg %p11
  $region15: #{tpu_custom_call.1} parent=0 // pred_check_branch
    %108 = sbr.rel (%p106) target = $region17
  $region16: #{tpu_custom_call.1} parent=0 // pred_region
    %v109 = vld [vmem:[#allocation2] sm:$0xff]
    %v110 = vld [vmem:[#allocation2 + $0x8] sm:$0xff]
    %v111 = vld [vmem:[#allocation3] sm:$0xff]
    %v112 = vld [vmem:[#allocation3 + $0x8] sm:$0xff]
    %v113 = vlog2.pop %v111
    %v114 = vmul.f32 %v113, 0.6931472
    %v115 = vlog2.pop %v112
    %v116 = vmul.f32 %v115, 0.6931472
    %v117 = vadd.f32 %v109, %v114
    %v118 = vadd.f32 %v110, %v116
    %v119 = vld [vmem:[#allocation4] sm:$0xff]
    %v120 = vld [vmem:[#allocation4 + $0x8] sm:$0xff]
    %v121 = vsub.f32 %v117, %v119
    %v122 = vsub.f32 %v118, %v120
    %123 = vst.msk [vmem:[%s2] sm:$0xff] %vm52, %v121
    %124 = vst.msk [vmem:[%s2 + $0x8] sm:$0xff] %vm52, %v122
  $region17: #{tpu_custom_call.1} parent=0 // pred_fallthru
    _
  // Predicated region
  $region18: #{tpu_custom_call.1} parent=0 // pred_check
    _
  $region19: #{tpu_custom_call.1} parent=0 // pred_check_branch
    %126 = sbr.rel (0) target = $region21
  $region20: #{tpu_custom_call.1} parent=0 // pred_region
    _
  $region21: #{tpu_custom_call.1} parent=0 // pred_fallthru
    _
  // Predicated region
  $region22: #{tpu_custom_call.1} parent=0 // pred_check
    _
  $region23: #{tpu_custom_call.1} parent=0 // pred_check_branch
    %128 = sbr.rel (0) target = $region25
  $region24: #{tpu_custom_call.1} parent=0 // pred_region
    _
  $region25: #{tpu_custom_call.1} parent=0 // pred_fallthru
    _

</llo_original>
